<compile_context>
chip_gen: v5e
topology: v5e:2x2
jax: 0.10.0
libtpu: 0.0.40
codegen_flags: <defaults>
</compile_context>

<pallas_src>
import jax
import jax.numpy as jnp
from jax.experimental import pallas as pl
from jax.experimental.pallas import tpu as pltpu

OUT_LANES = 128  # lane-dense padded logit/output width


def _round_up(x, m):
    return ((x + m - 1) // m) * m


def tiny_model_kernel(x_ref, w1_ref, b1_ref, w2_ref, b2_ref, o_ref):
    # x_ref: (TB, 100) bf16, w1_ref: (100, 200) bf16, b1_ref: (1, 200) f32,
    # w2_ref: (200, 128) bf16 (zero-padded cols), b2_ref: (1, 128) f32 (-1e30 pad),
    # o_ref: (TB, 128) f32.
    x = x_ref[...]

    # linear1 + ReLU: bf16 MXU matmul, f32 accumulate, f32 elementwise.
    h = jnp.dot(x, w1_ref[...], preferred_element_type=jnp.float32) + b1_ref[...]
    h = jnp.maximum(h, 0.0)

    # linear2: bf16 MXU matmul, f32 accumulate. Pad lanes get bias -1e30.
    logits = (
        jnp.dot(h.astype(jnp.bfloat16), w2_ref[...], preferred_element_type=jnp.float32)
        + b2_ref[...]
    )

    # Stable softmax over the last dim (PyTorch legacy dim=1 for a 2-D input).
    # Pad lanes: exp(-1e30 - m) underflows to 0, so they don't perturb the sum.
    m = jnp.max(logits, axis=-1, keepdims=True)
    e = jnp.exp(logits - m)
    denom = jnp.sum(e, axis=-1, keepdims=True)
    o_ref[...] = (e * pl.reciprocal(denom, approx=True)).astype(o_ref.dtype)


def tiny_model(x, w1, b1, w2, b2, *, tb=256):
    B, in_dim = x.shape
    out_dim = w2.shape[1]

    # Pick a batch tile: multiple of 8 (f32 sublane), capped at `tb`.
    TB = min(tb, _round_up(B, 8))
    B_pad = _round_up(B, TB)
    if B_pad != B:
        x = jnp.pad(x, ((0, B_pad - B), (0, 0)))

    # Lane-dense output padding: zero weight columns, -1e30 bias on pad lanes.
    w2p = jnp.pad(w2, ((0, 0), (0, OUT_LANES - out_dim)))
    b2p = jnp.pad(b2, ((0, 0), (0, OUT_LANES - out_dim)), constant_values=-1e30)

    # bf16 inputs for the MXU; biases stay f32.
    xb = x.astype(jnp.bfloat16)
    w1b = w1.astype(jnp.bfloat16)
    w2b = w2p.astype(jnp.bfloat16)

    out = pl.pallas_call(
        tiny_model_kernel,
        out_shape=jax.ShapeDtypeStruct((B_pad, OUT_LANES), jnp.float32),
        grid_spec=pl.GridSpec(
            grid=(B_pad // TB,),
            in_specs=[
                pl.BlockSpec((TB, in_dim), lambda i: (i, 0)),      # x: tiled over batch
                pl.BlockSpec(w1b.shape, lambda i: (0, 0)),          # weights: VMEM-resident
                pl.BlockSpec(b1.shape, lambda i: (0, 0)),
                pl.BlockSpec(w2b.shape, lambda i: (0, 0)),
                pl.BlockSpec(b2p.shape, lambda i: (0, 0)),
            ],
            out_specs=pl.BlockSpec((TB, OUT_LANES), lambda i: (i, 0)),
        ),
        compiler_params=pltpu.CompilerParams(
            dimension_semantics=("parallel",),          # shard batch steps across TCs (v7x)
            vmem_limit_bytes=32 * 1024 * 1024,          # resident weights + double-buffered tiles
        ),
    )(xb, w1b, b1, w2b, b2p)

    return out[:B, :out_dim]


def init_params(key):
    # nn.Linear shapes: linear1 weight (200,100)/bias (200,), linear2 weight (10,200)/bias (10,).
    # Stored transposed as [in, out] for the kernel; biases as (1, out) rows.
    k1, k2, k3, k4 = jax.random.split(key, 4)
    bound1 = 1.0 / (100.0 ** 0.5)
    bound2 = 1.0 / (200.0 ** 0.5)
    w1 = jax.random.uniform(k1, (100, 200), jnp.float32, -bound1, bound1)
    b1 = jax.random.uniform(k2, (1, 200), jnp.float32, -bound1, bound1)
    w2 = jax.random.uniform(k3, (200, 10), jnp.float32, -bound2, bound2)
    b2 = jax.random.uniform(k4, (1, 10), jnp.float32, -bound2, bound2)
    return w1, b1, w2, b2


if __name__ == "__main__":
    key = jax.random.PRNGKey(0)
    k_x, k_p = jax.random.split(key)

    B = 8  # small batch
    x = jax.random.uniform(k_x, (B, 100), jnp.float32)
    w1, b1, w2, b2 = init_params(k_p)

    out = tiny_model(x, w1, b1, w2, b2)
    jax.block_until_ready(out)

    # Reference with the same bf16-matmul / f32-accumulate path (apples-to-apples).
    h_ref = jnp.maximum(
        jnp.dot(x.astype(jnp.bfloat16), w1.astype(jnp.bfloat16),
                preferred_element_type=jnp.float32) + b1, 0.0)
    logits_ref = jnp.dot(h_ref.astype(jnp.bfloat16), w2.astype(jnp.bfloat16),
                         preferred_element_type=jnp.float32) + b2
    ref = jax.nn.softmax(logits_ref, axis=-1)

    assert out.shape == (B, 10)
    assert jnp.allclose(out, ref, atol=5e-3, rtol=5e-3), "mismatch vs bf16 reference"
    assert jnp.allclose(jnp.sum(out, axis=-1), 1.0, atol=5e-3), "rows do not sum to 1"

    print("KERNEL_OK")
</pallas_src>

<mosaic_0001>
module attributes {stable_mosaic.version = 11 : i64} {
  func.func @tiny_model_kernel(%arg0: i32, %arg1: memref<8x100xbf16, #tpu.memory_space<vmem>>, %arg2: memref<100x200xbf16, #tpu.memory_space<vmem>>, %arg3: memref<1x200xf32, #tpu.memory_space<vmem>>, %arg4: memref<200x128xbf16, #tpu.memory_space<vmem>>, %arg5: memref<1x128xf32, #tpu.memory_space<vmem>>, %arg6: memref<8x128xf32, #tpu.memory_space<vmem>>) attributes {dimension_semantics = [#tpu.dimension_semantics<parallel>], iteration_bounds = array<i64: 1>, scalar_prefetch = 0 : i64, scratch_operands = 0 : i64, tpu.core_type = #tpu.core_type<tc>, window_params = [{transform_indices = @transform_0, window_bounds = array<i64: 8, 100>}, {pipeline_mode = #tpu.pipeline_mode<synchronous>, transform_indices = @transform_1, window_bounds = array<i64: 100, 200>}, {pipeline_mode = #tpu.pipeline_mode<synchronous>, transform_indices = @transform_2, window_bounds = array<i64: 1, 200>}, {pipeline_mode = #tpu.pipeline_mode<synchronous>, transform_indices = @transform_3, window_bounds = array<i64: 200, 128>}, {pipeline_mode = #tpu.pipeline_mode<synchronous>, transform_indices = @transform_4, window_bounds = array<i64: 1, 128>}, {transform_indices = @transform_5, window_bounds = array<i64: 8, 128>}]} {
    %c0 = arith.constant 0 : index
    %c0_0 = arith.constant 0 : index
    %0 = vector.load %arg1[%c0, %c0_0] : memref<8x100xbf16, #tpu.memory_space<vmem>>, vector<8x100xbf16>
    %c0_1 = arith.constant 0 : index
    %c0_2 = arith.constant 0 : index
    %1 = vector.load %arg2[%c0_1, %c0_2] : memref<100x200xbf16, #tpu.memory_space<vmem>>, vector<100x200xbf16>
    %cst = arith.constant dense<0.000000e+00> : vector<8x200xf32>
    %2 = tpu.matmul %0, %1, %cst {dimension_numbers = #tpu.dot_dimension_numbers<[1], [0], [0], [1], [0, 0, 1, 1], [], []>} : vector<8x100xbf16>, vector<100x200xbf16>, vector<8x200xf32> -> vector<8x200xf32>
    %c0_3 = arith.constant 0 : index
    %c0_4 = arith.constant 0 : index
    %3 = vector.load %arg3[%c0_3, %c0_4] : memref<1x200xf32, #tpu.memory_space<vmem>>, vector<1x200xf32>
    %4 = vector.broadcast %3 : vector<1x200xf32> to vector<8x200xf32>
    %5 = arith.addf %2, %4 : vector<8x200xf32>
    %cst_5 = arith.constant 0.000000e+00 : f32
    %6 = vector.broadcast %cst_5 : f32 to vector<8x200xf32>
    %7 = arith.maximumf %5, %6 : vector<8x200xf32>
    %8 = arith.truncf %7 : vector<8x200xf32> to vector<8x200xbf16>
    %c0_6 = arith.constant 0 : index
    %c0_7 = arith.constant 0 : index
    %9 = vector.load %arg4[%c0_6, %c0_7] : memref<200x128xbf16, #tpu.memory_space<vmem>>, vector<200x128xbf16>
    %cst_8 = arith.constant dense<0.000000e+00> : vector<8x128xf32>
    %10 = tpu.matmul %8, %9, %cst_8 {dimension_numbers = #tpu.dot_dimension_numbers<[1], [0], [0], [1], [0, 0, 1, 1], [], []>} : vector<8x200xbf16>, vector<200x128xbf16>, vector<8x128xf32> -> vector<8x128xf32>
    %c0_9 = arith.constant 0 : index
    %c0_10 = arith.constant 0 : index
    %11 = vector.load %arg5[%c0_9, %c0_10] : memref<1x128xf32, #tpu.memory_space<vmem>>, vector<1x128xf32>
    %12 = vector.broadcast %11 : vector<1x128xf32> to vector<8x128xf32>
    %13 = arith.addf %10, %12 : vector<8x128xf32>
    %cst_11 = arith.constant dense<0xFF800000> : vector<8xf32>
    %14 = vector.multi_reduction <maximumf>, %13, %cst_11 [1] : vector<8x128xf32> to vector<8xf32>
    %15 = vector.shape_cast %14 : vector<8xf32> to vector<8x1xf32>
    %16 = vector.broadcast %15 : vector<8x1xf32> to vector<8x128xf32>
    %17 = arith.subf %13, %16 : vector<8x128xf32>
    %18 = math.exp %17 : vector<8x128xf32>
    %cst_12 = arith.constant dense<0.000000e+00> : vector<8xf32>
    %19 = vector.multi_reduction <add>, %18, %cst_12 [1] : vector<8x128xf32> to vector<8xf32>
    %20 = vector.shape_cast %19 : vector<8xf32> to vector<8x1xf32>
    %21 = tpu.reciprocal %20 {approx = true} : vector<8x1xf32> -> vector<8x1xf32>
    %22 = vector.broadcast %21 : vector<8x1xf32> to vector<8x128xf32>
    %23 = arith.mulf %18, %22 : vector<8x128xf32>
    %c0_13 = arith.constant 0 : index
    %c0_14 = arith.constant 0 : index
    %24 = vector.load %arg6[%c0_13, %c0_14] : memref<8x128xf32, #tpu.memory_space<vmem>>, vector<8x128xf32>
    tpu.vector_store %arg6[%c0_13, %c0_14], %23 {strides = array<i32>} : memref<8x128xf32, #tpu.memory_space<vmem>>, vector<8x128xf32>,
    return
  }
  func.func @transform_0(%arg0: i32) -> (i32, i32) {
    %c0_i32 = arith.constant 0 : i32
    %c0_i32_0 = arith.constant 0 : i32
    return %arg0, %c0_i32 : i32, i32
  }
  func.func @transform_1(%arg0: i32) -> (i32, i32) {
    %c0_i32 = arith.constant 0 : i32
    %c0_i32_0 = arith.constant 0 : i32
    %c0_i32_1 = arith.constant 0 : i32
    return %c0_i32, %c0_i32_0 : i32, i32
  }
  func.func @transform_2(%arg0: i32) -> (i32, i32) {
    %c0_i32 = arith.constant 0 : i32
    %c0_i32_0 = arith.constant 0 : i32
    %c0_i32_1 = arith.constant 0 : i32
    return %c0_i32, %c0_i32_0 : i32, i32
  }
  func.func @transform_3(%arg0: i32) -> (i32, i32) {
    %c0_i32 = arith.constant 0 : i32
    %c0_i32_0 = arith.constant 0 : i32
    %c0_i32_1 = arith.constant 0 : i32
    return %c0_i32, %c0_i32_0 : i32, i32
  }
  func.func @transform_4(%arg0: i32) -> (i32, i32) {
    %c0_i32 = arith.constant 0 : i32
    %c0_i32_0 = arith.constant 0 : i32
    %c0_i32_1 = arith.constant 0 : i32
    return %c0_i32, %c0_i32_0 : i32, i32
  }
  func.func @transform_5(%arg0: i32) -> (i32, i32) {
    %c0_i32 = arith.constant 0 : i32
    %c0_i32_0 = arith.constant 0 : i32
    return %arg0, %c0_i32 : i32, i32
  }
}

</mosaic_0001>

<llo_original>
// kernel: tpu_custom_call.1
$region0: #{tpu_custom_call.1}
  #allocation0 [shape = 'u32[]', space=smem, size = 0x4, offset = 0x4, fixed_abs, tag = 'smem constant byte address 0x4 - core index']
  #allocation1 [shape = 'u32[72,128]{1,0:T(1,128)}', space=vmem, size = 0x9000, scoped, tag = 'internal scratch']
  %s0 = inlined_call_operand.vmem [shape: bf16[8,100], index: 0, kind: input, shape index: {}]
  %s1 = inlined_call_operand.vmem [shape: bf16[100,200], index: 1, kind: input, shape index: {}]
  %s2 = inlined_call_operand.vmem [shape: f32[1,200], index: 2, kind: input, shape index: {}]
  %s3 = inlined_call_operand.vmem [shape: bf16[200,128], index: 3, kind: input, shape index: {}]
  %s4 = inlined_call_operand.vmem [shape: f32[1,128], index: 4, kind: input, shape index: {}]
  %s5 = inlined_call_operand.hbm [shape: f32[8,128], index: 5, kind: output, shape index: {}]
  %s6 = sld [smem:[#allocation0]]
  $region30: #{tpu_custom_call.1} parent=0
    _
  %s8 = ssub.s32 1, %s6
  %s9 = scalar_select 0, %s8, %s6
  $region1: #{tpu_custom_call.1} parent=0
    #allocation2 [shape = 'u8[4096]{0}', space=vmem, size = 0x1000, scoped, tag = 'output window, operand 0, single buffered']
    #allocation3 [shape = 's32[1]{0}', space=sflag, size = 0x4, scoped, tag = 'scoped memory for tpu_custom_call.1']
    %10 = vsyncpa [#allocation3], 0
    // Predicated region
    $region2: #{tpu_custom_call.1} parent=1 // pred_check
      _
    $region3: #{tpu_custom_call.1} parent=1 // pred_check_branch
      %12 = sbr.rel (0) target = $region5
    $region4: #{tpu_custom_call.1} parent=1 // pred_region
      _
    $region5: #{tpu_custom_call.1} parent=1 // pred_fallthru
      _
    // Predicated region
    $region6: #{tpu_custom_call.1} parent=1 // pred_check
      _
    $region7: #{tpu_custom_call.1} parent=1 // pred_check_branch
      %14 = sbr.rel (0) target = $region9
    $region8: #{tpu_custom_call.1} parent=1 // pred_region
      _
    $region9: #{tpu_custom_call.1} parent=1 // pred_fallthru
      _
    // Predicated region
    $region10: #{tpu_custom_call.1} parent=1 // pred_check
      _
    $region11: #{tpu_custom_call.1} parent=1 // pred_check_branch
      %16 = sbr.rel (0) target = $region13
    $region12: #{tpu_custom_call.1} parent=1 // pred_region
      _
    $region13: #{tpu_custom_call.1} parent=1 // pred_fallthru
      _
    // Predicated region
    $region14: #{tpu_custom_call.1} parent=1 // pred_check
      _
    $region15: #{tpu_custom_call.1} parent=1 // pred_check_branch
      %18 = sbr.rel (0) target = $region17
    $region16: #{tpu_custom_call.1} parent=1 // pred_region
      _
    $region17: #{tpu_custom_call.1} parent=1 // pred_fallthru
      _
    // Predicated region
    $region18: #{tpu_custom_call.1} parent=1 // pred_check
      _
    $region19: #{tpu_custom_call.1} parent=1 // pred_check_branch
      %20 = sbr.rel (0) target = $region21
    $region20: #{tpu_custom_call.1} parent=1 // pred_region
      _
    $region21: #{tpu_custom_call.1} parent=1 // pred_fallthru
      _
    %v22 = vld [vmem:[%s0] sm:$0xf]
    %v23 = vld [vmem:[%s1] sm:$0xff]
    %v24 = vld [vmem:[%s1 + $0x8] sm:$0xff]
    %v25 = vld [vmem:[%s1 + $0x10] sm:$0xff]
    %v26 = vld [vmem:[%s1 + $0x18] sm:$0xff]
    %v27 = vld [vmem:[%s1 + $0x20] sm:$0xff]
    %v28 = vld [vmem:[%s1 + $0x28] sm:$0xff]
    %v29 = vld [vmem:[%s1 + $0x30] sm:$0xff]
    %v30 = vld [vmem:[%s1 + $0x38] sm:$0xff]
    %v31 = vld [vmem:[%s1 + $0x40] sm:$0xff]
    %v32 = vld [vmem:[%s1 + $0x48] sm:$0xff]
    %v33 = vld [vmem:[%s1 + $0x50] sm:$0xff]
    %v34 = vld [vmem:[%s1 + $0x58] sm:$0xff]
    %v35 = vld [vmem:[%s1 + $0x60] sm:$0x33]
    %v36 = vld [vmem:[%s2] sm:$0x3]
    %v38 = vperm.slane %v36, 0
    %v39 = vperm.slane %v36, 1
    %v55 = vunpack.c.l.b16 %v23
    %v56 = vunpack.c.h.b16 %v23
    %v57 = vunpack.c.l.b16 %v24
    %v58 = vunpack.c.h.b16 %v24
    %v59 = vunpack.c.l.b16 %v25
    %v60 = vunpack.c.h.b16 %v25
    %v61 = vunpack.c.l.b16 %v26
    %v62 = vunpack.c.h.b16 %v26
    %v63 = vunpack.c.l.b16 %v27
    %v64 = vunpack.c.h.b16 %v27
    %v65 = vunpack.c.l.b16 %v28
    %v66 = vunpack.c.h.b16 %v28
    %v67 = vunpack.c.l.b16 %v29
    %v68 = vunpack.c.h.b16 %v29
    %v69 = vunpack.c.l.b16 %v30
    %v70 = vunpack.c.h.b16 %v30
    %v71 = vunpack.c.l.b16 %v31
    %v72 = vunpack.c.h.b16 %v31
    %v73 = vunpack.c.l.b16 %v32
    %v74 = vunpack.c.h.b16 %v32
    %v75 = vunpack.c.l.b16 %v33
    %v76 = vunpack.c.h.b16 %v33
    %v77 = vunpack.c.l.b16 %v34
    %v78 = vunpack.c.h.b16 %v34
    %v79 = vunpack.c.l.b16 %v35
    %v80 = vunpack.c.h.b16 %v35
    %v81 = vpack.c.b16 %v57, %v55
    %v82 = vpack.c.b16 %v58, %v56
    %v83 = vpack.c.b16 %v61, %v59
    %v84 = vpack.c.b16 %v62, %v60
    %v85 = vpack.c.b16 %v65, %v63
    %v86 = vpack.c.b16 %v66, %v64
    %v87 = vpack.c.b16 %v69, %v67
    %v88 = vpack.c.b16 %v70, %v68
    %v89 = vpack.c.b16 %v73, %v71
    %v90 = vpack.c.b16 %v74, %v72
    %v91 = vpack.c.b16 %v77, %v75
    %v92 = vpack.c.b16 %v78, %v76
    %v93 = vpack.c.b16 %v79, %v79
    %v94 = vpack.c.b16 %v80, %v80
    %vm107 = vcmask 818176
    %v109 = vsel %vm107, %v22, 0
    %vm111 = vcmask 1041408
    %v113 = vsel %vm111, %v93, 0
    %v116 = vsel %vm111, %v94, 0
    %118 = vmatpush.bf16.msra.mxu0 0
    %119 = vmatpush.bf16.msra.mxu0 %v113
    %120 = vmatpush.bf16.msra.mxu0 %v91
    %121 = vmatpush.bf16.msra.mxu0 %v89
    %122 = vmatpush.bf16.msra.mxu0 %v87
    %123 = vmatpush.bf16.msra.mxu0 %v85
    %124 = vmatpush.bf16.msra.mxu0 %v83
    %125 = vmatpush.bf16.msra.mxu0 %v81
    %126 = vmatmul.bf16.gmra.mxu0 %v109
    %v127 = vpop.f32.mrf.mxu0
    %v128 = vadd.f32 %v38, %v127
    %v129 = vpop.f32.mrf.mxu0
    %130 = vdwg.mxu0
    %131 = vmatpush.bf16.msra.mxu0 0
    %132 = vmatpush.bf16.msra.mxu0 %v116
    %133 = vmatpush.bf16.msra.mxu0 %v92
    %134 = vmatpush.bf16.msra.mxu0 %v90
    %135 = vmatpush.bf16.msra.mxu0 %v88
    %136 = vmatpush.bf16.msra.mxu0 %v86
    %137 = vmatpush.bf16.msra.mxu0 %v84
    %138 = vmatpush.bf16.msra.mxu0 %v82
    %139 = vmatmul.bf16.gmra.mxu0 %v109
    %v140 = vpop.f32.mrf.mxu0
    %v141 = vadd.f32 %v39, %v140
    %v142 = vpop.f32.mrf.mxu0
    %143 = vdwg.mxu0
    %v144 = vmax.f32 %v128, 0.0
    %v145 = vmax.f32 %v141, 0.0
    %v146 = vpack.c.bf16 %v144, %v144
    %v147 = vpack.c.bf16 %v145, %v145
    %v148 = vld [vmem:[%s3] sm:$0xf]
    %v149 = vld [vmem:[%s3 + $0x4] sm:$0xf]
    %v150 = vld [vmem:[%s3 + $0x8] sm:$0xf]
    %v151 = vld [vmem:[%s3 + $0xc] sm:$0xf]
    %v152 = vld [vmem:[%s3 + $0x10] sm:$0xf]
    %v153 = vld [vmem:[%s3 + $0x14] sm:$0xf]
    %v154 = vld [vmem:[%s3 + $0x18] sm:$0xf]
    %v155 = vld [vmem:[%s3 + $0x1c] sm:$0xf]
    %v156 = vld [vmem:[%s3 + $0x20] sm:$0xf]
    %v157 = vld [vmem:[%s3 + $0x24] sm:$0xf]
    %v158 = vld [vmem:[%s3 + $0x28] sm:$0xf]
    %v159 = vld [vmem:[%s3 + $0x2c] sm:$0xf]
    %v160 = vld [vmem:[%s3 + $0x30] sm:$0xf]
    %v161 = vld [vmem:[%s3 + $0x34] sm:$0xf]
    %v162 = vld [vmem:[%s3 + $0x38] sm:$0xf]
    %v163 = vld [vmem:[%s3 + $0x3c] sm:$0xf]
    %v164 = vld [vmem:[%s3 + $0x40] sm:$0xf]
    %v165 = vld [vmem:[%s3 + $0x44] sm:$0xf]
    %v166 = vld [vmem:[%s3 + $0x48] sm:$0xf]
    %v167 = vld [vmem:[%s3 + $0x4c] sm:$0xf]
    %v168 = vld [vmem:[%s3 + $0x50] sm:$0xf]
    %v169 = vld [vmem:[%s3 + $0x54] sm:$0xf]
    %v170 = vld [vmem:[%s3 + $0x58] sm:$0xf]
    %v171 = vld [vmem:[%s3 + $0x5c] sm:$0xf]
    %v172 = vld [vmem:[%s3 + $0x60] sm:$0xf]
    %v173 = vld [vmem:[%s4] sm:$0x1]
    %v175 = vperm.slane %v173, 0
    %v202 = vunpack.c.l.b16 %v148
    %v203 = vunpack.c.l.b16 %v149
    %v204 = vunpack.c.l.b16 %v150
    %v205 = vunpack.c.l.b16 %v151
    %v206 = vunpack.c.l.b16 %v152
    %v207 = vunpack.c.l.b16 %v153
    %v208 = vunpack.c.l.b16 %v154
    %v209 = vunpack.c.l.b16 %v155
    %v210 = vunpack.c.l.b16 %v156
    %v211 = vunpack.c.l.b16 %v157
    %v212 = vunpack.c.l.b16 %v158
    %v213 = vunpack.c.l.b16 %v159
    %v214 = vunpack.c.l.b16 %v160
    %v215 = vunpack.c.l.b16 %v161
    %v216 = vunpack.c.l.b16 %v162
    %v217 = vunpack.c.l.b16 %v163
    %v218 = vunpack.c.l.b16 %v164
    %v219 = vunpack.c.l.b16 %v165
    %v220 = vunpack.c.l.b16 %v166
    %v221 = vunpack.c.l.b16 %v167
    %v222 = vunpack.c.l.b16 %v168
    %v223 = vunpack.c.l.b16 %v169
    %v224 = vunpack.c.l.b16 %v170
    %v225 = vunpack.c.l.b16 %v171
    %v226 = vunpack.c.l.b16 %v172
    %v227 = vpack.c.b16 %v203, %v202
    %v228 = vpack.c.b16 %v205, %v204
    %v229 = vpack.c.b16 %v207, %v206
    %v230 = vpack.c.b16 %v209, %v208
    %v231 = vpack.c.b16 %v211, %v210
    %v232 = vpack.c.b16 %v213, %v212
    %v233 = vpack.c.b16 %v215, %v214
    %v234 = vpack.c.b16 %v217, %v216
    %v235 = vpack.c.b16 %v219, %v218
    %v236 = vpack.c.b16 %v221, %v220
    %v237 = vpack.c.b16 %v223, %v222
    %v238 = vpack.c.b16 %v225, %v224
    %v239 = vpack.c.b16 %v226, %v226
    %vm252 = vcmask 588800
    %v254 = vsel %vm252, %v147, 0
    %vm256 = vcmask 1043456
    %v258 = vsel %vm256, %v239, 0
    %260 = vmatpush.bf16.msra.mxu0 %v234
    %261 = vmatpush.bf16.msra.mxu0 %v233
    %262 = vmatpush.bf16.msra.mxu0 %v232
    %263 = vmatpush.bf16.msra.mxu0 %v231
    %264 = vmatpush.bf16.msra.mxu0 %v230
    %265 = vmatpush.bf16.msra.mxu0 %v229
    %266 = vmatpush.bf16.msra.mxu0 %v228
    %267 = vmatpush.bf16.msra.mxu0 %v227
    %268 = vmatmul.bf16.gmra.mxu0 %v146
    %v269 = vpop.f32.mrf.mxu0
    %v270 = vadd.f32 %v175, %v269
    %v271 = vpop.f32.mrf.mxu0
    %272 = vdwg.mxu0
    %273 = vmatpush.bf16.msra.mxu0 0
    %274 = vmatpush.bf16.msra.mxu0 0
    %275 = vmatpush.bf16.msra.mxu0 0
    %276 = vmatpush.bf16.msra.mxu0 %v258
    %277 = vmatpush.bf16.msra.mxu0 %v238
    %278 = vmatpush.bf16.msra.mxu0 %v237
    %279 = vmatpush.bf16.msra.mxu0 %v236
    %280 = vmatpush.bf16.msra.mxu0 %v235
    %281 = vmatmul.bf16.gmra.mxu0 %v254
    %v282 = vpop.f32.mrf.mxu0
    %v283 = vadd.f32 %v270, %v282
    %v284 = vpop.f32.mrf.mxu0
    %285 = vdwg.mxu0
    %286 = vmax.xlane.f32.xlu0 %v283
    %v287 = vpop.xlane.xlu0 %286
    %v288 = vsub.f32 %v283, %v287
    %v289 = vmul.f32 %v288, 1.442695
    %v290 = vpow.pop %v289
    %291 = vadd.xlane.f32.xlu0 %v290
    %v292 = vpop.xlane.xlu0 %291
    %v293 = vrcp.pop %v292
    %v294 = vmul.f32 %v290, %v293
    %295 = vst [vmem:[#allocation2] sm:$0xff] %v294
    // Predicated region
    $region22: #{tpu_custom_call.1} parent=1 // pred_check
      _
    $region23: #{tpu_custom_call.1} parent=1 // pred_check_branch
      %297 = sbr.rel (0) target = $region25
    $region24: #{tpu_custom_call.1} parent=1 // pred_region
      %299 = vsyncadd [#allocation3], 0
      %s301 = sshll.u32 [#allocation2], 4
      %s302 = int_to_ptr.vmem [resolvable:$true] %s301
      %s303 = sshll.u32 %s5, 4
      %s304 = int_to_ptr.hbm [resolvable:$true] %s303
      %306 = dma.vmem_to_hbm [thread:$0]  %s302, 128, %s304, [#allocation3]
    $region25: #{tpu_custom_call.1} parent=1 // pred_fallthru
      _
    // Predicated region
    $region26: #{tpu_custom_call.1} parent=1 // pred_check
      _
    $region27: #{tpu_custom_call.1} parent=1 // pred_check_branch
      %308 = sbr.rel (0) target = $region29
    $region28: #{tpu_custom_call.1} parent=1 // pred_region
      %310 = dma.done [#allocation3], 128
    $region29: #{tpu_custom_call.1} parent=1 // pred_fallthru
      _
    %311 = vsyncpa [#allocation3], 1

</llo_original>
